<compile_context>
chip_gen: v6e
topology: v6e:2x2x1
jax: 0.10.0
libtpu: 0.0.40
codegen_flags: <defaults>
</compile_context>

<pallas_src>
import jax
import jax.numpy as jnp
from jax.experimental import pallas as pl
from jax.experimental.pallas import tpu as pltpu


# ----------------------------- kernel weights ------------------------------ #

def _gaussian_1d(kernel_size, sigma):
    """Normalized 1-D Gaussian factor (float32)."""
    x = jnp.arange(kernel_size, dtype=jnp.float32) - kernel_size // 2
    k = jnp.exp(-0.5 * (x / sigma) ** 2)
    return k / jnp.sum(k)


def gaussian_kernel(kernel_size, sigma):
    """JAX port of the PyTorch gaussian_kernel helper (2-D, normalized)."""
    if not isinstance(kernel_size, (tuple, list)):
        kernel_size = (kernel_size, kernel_size)
    if not isinstance(sigma, (tuple, list)):
        sigma = (sigma, sigma)
    kx, ky = kernel_size
    sx, sy = sigma
    x = jnp.arange(kx, dtype=jnp.float32) - kx // 2
    y = jnp.arange(ky, dtype=jnp.float32) - ky // 2
    X, Y = jnp.meshgrid(x, y, indexing="ij")  # torch.meshgrid default is "ij"
    k = jnp.exp(-0.5 * ((X / sx) ** 2 + (Y / sy) ** 2))
    return k / jnp.sum(k)


def _reflect_tap_weights(k1d, size, padded_size):
    """Fold reflect padding into per-output-position tap weights.

    Returns W of shape (K, padded_size) such that for output position q < size
        out[q] = sum_i W[i, q] * in[(q + i - K//2) mod padded_size]
    reproduces the reflect-padded 1-D correlation with kernel k1d.  Positions
    q >= size (zero padding added only for lane/sublane alignment) get weight
    0, and any tap whose circular wrap would leave [0, size) also has weight 0
    -- so wrapped/padded garbage is always multiplied by exactly 0.
    """
    K = int(k1d.shape[0])
    p = K // 2
    q = jnp.arange(size)
    w = jnp.zeros((K, padded_size), jnp.float32)
    for j in range(K):
        src = q + (j - p)
        src = jnp.abs(src)                                       # reflect low
        src = jnp.where(src >= size, 2 * (size - 1) - src, src)  # reflect high
        d_eff = src - q                                          # in [-p, p]
        for i in range(K):
            w = w.at[i, :size].add(
                jnp.where(d_eff == i - p, k1d[j], 0.0).astype(jnp.float32))
    return w


# ------------------------------ Pallas kernel ------------------------------ #

def _blur_kernel(wx_ref, wy_ref, x_ref, o_ref):
    """Separable reflect-padded blur on a block of images.

    wx_ref: (Kx, Hp, 1) f32 VMEM -- folded per-row weights (vertical pass)
    wy_ref: (Ky, 1, Wp) f32 VMEM -- folded per-column weights (horizontal pass)
    x_ref : (nblk, Hp, Wp) VMEM  -- input images (spatially aligned/padded)
    o_ref : (nblk, Hp, Wp) VMEM  -- blurred output images
    """
    _, Hp, Wp = x_ref.shape
    Kx = wx_ref.shape[0]
    Ky = wy_ref.shape[0]
    px, py = Kx // 2, Ky // 2

    x = x_ref[...]
    if x.dtype != jnp.float32:
        x = x.astype(jnp.float32)  # only non-f32 inputs pay this copy

    # Vertical pass (sublane axis): one XLU roll + one FMA per tap.  Reflect
    # padding (and alignment zero-padding) is folded into wx, so rows brought
    # in by the circular wrap always see weight 0.
    v = None
    for i in range(Kx):
        d = i - px
        xi = x if d == 0 else pltpu.roll(x, (-d) % Hp, axis=1)
        term = wx_ref[i] * xi
        v = term if v is None else v + term

    # Horizontal pass (lane axis): same scheme along lanes.
    o = None
    for j in range(Ky):
        e = j - py
        vj = v if e == 0 else pltpu.roll(v, (-e) % Wp, axis=2)
        term = wy_ref[j] * vj
        o = term if o is None else o + term
    # TODO(synk): on v7x (3.2 TB/s HBM) the horizontal taps make this
    # VALU-bound; offload the W pass to the MXU as a banded (Wp, Wp) matmul.

    o_ref[...] = o.astype(o_ref.dtype)


# ------------------------------- wrapper ------------------------------------ #

def _round_up(x, m):
    return ((x + m - 1) // m) * m


def _sublane_multiple(dtype):
    return {4: 8, 2: 16, 1: 32}.get(jnp.dtype(dtype).itemsize, 8)


def _choose_block_images(n, h, w, itemsize, target_bytes=4 << 20):
    """Images per grid step: ~4 MiB input blocks, but always >= 2 grid steps
    when possible so the single 'parallel' axis can shard across v7x's two
    TensorCores and the pipeline has overlap."""
    per_img = max(1, h * w * itemsize)
    nb = max(1, min(n, target_bytes // per_img))
    if n >= 2:
        nb = min(nb, (n + 1) // 2)
    return int(nb)


def blur_pallas(img, kx, ky):
    """Depthwise 'same' Gaussian blur (separable), reflect-padded.

    img : (B, C, H, W)
    kx  : (Kx,) float32 normalized vertical (H-axis) weights
    ky  : (Ky,) float32 normalized horizontal (W-axis) weights
    """
    B, C, H, W = img.shape
    Kx, Ky = int(kx.shape[0]), int(ky.shape[0])
    px, py = Kx // 2, Ky // 2
    assert px < H and py < W, "reflect padding requires kernel//2 < spatial dim"

    N = B * C
    x = img.reshape(N, H, W)

    # Pad spatial dims up to roll-friendly (sublane/lane aligned) sizes.  The
    # padded rows/columns carry zero tap weight, so they never affect valid
    # outputs; typical image sizes need no padding at all.
    Hp = _round_up(H, _sublane_multiple(img.dtype))
    Wp = _round_up(W, 128)
    padded = (Hp, Wp) != (H, W)
    if padded:
        x = jnp.pad(x, ((0, 0), (0, Hp - H), (0, Wp - W)))

    wx = _reflect_tap_weights(kx, H, Hp)[:, :, None]   # (Kx, Hp, 1)
    wy = _reflect_tap_weights(ky, W, Wp)[:, None, :]   # (Ky, 1, Wp)

    nblk = _choose_block_images(N, Hp, Wp, x.dtype.itemsize)
    grid = (pl.cdiv(N, nblk),)  # ragged last block is fine: images independent

    # TODO(synk): for very large single images (e.g. f32 4K, ~33 MiB/channel)
    # add H-row tiling with a (Kx-1)-row halo instead of whole-image blocks.
    out = pl.pallas_call(
        _blur_kernel,
        out_shape=jax.ShapeDtypeStruct((N, Hp, Wp), img.dtype),
        grid_spec=pltpu.PrefetchScalarGridSpec(
            num_scalar_prefetch=0,
            grid=grid,
            in_specs=[
                # Tiny folded-weight tables: whole array, fetched once.
                pl.BlockSpec((Kx, Hp, 1), lambda n: (0, 0, 0)),
                pl.BlockSpec((Ky, 1, Wp), lambda n: (0, 0, 0)),
                # A block of whole images per grid step (W maps to lanes).
                pl.BlockSpec((nblk, Hp, Wp), lambda n: (n, 0, 0)),
            ],
            out_specs=pl.BlockSpec((nblk, Hp, Wp), lambda n: (n, 0, 0)),
        ),
        compiler_params=pltpu.CompilerParams(
            dimension_semantics=("parallel",),
            vmem_limit_bytes=64 << 20,
        ),
    )(wx, wy, x)

    if padded:
        out = out[:, :H, :W]
    return out.reshape(B, C, H, W)


# ------------------------------- reference --------------------------------- #

def blur_reference(img, kernel2d):
    """Plain-JAX reference: full 2-D shifted sum on a reflect-padded copy."""
    B, C, H, W = img.shape
    Kx, Ky = kernel2d.shape
    px, py = Kx // 2, Ky // 2
    xp = jnp.pad(img, ((0, 0), (0, 0), (px, px), (py, py)), mode="reflect")
    acc = jnp.zeros(img.shape, jnp.float32)
    for i in range(Kx):
        for j in range(Ky):
            acc = acc + kernel2d[i, j] * xp[:, :, i:i + H, j:j + W]
    return acc.astype(img.dtype)


class Blur:
    """JAX equivalent of the PyTorch Blur module (deterministic init)."""

    def __init__(self, kernel_size_x, kernel_size_y, sigma=1.5):
        if not isinstance(sigma, (tuple, list)):
            sigma = (sigma, sigma)
        self.kernel_size_x = kernel_size_x
        self.kernel_size_y = kernel_size_y
        self.sigma = sigma
        # Separable 1-D factors; their outer product equals the normalized
        # 2-D gaussian_kernel exactly (up to f32 rounding).
        self.kx = _gaussian_1d(kernel_size_x, sigma[0])
        self.ky = _gaussian_1d(kernel_size_y, sigma[1])
        self.kernel = gaussian_kernel((kernel_size_x, kernel_size_y), sigma)

    def __call__(self, img):
        return blur_pallas(img, self.kx, self.ky)


if __name__ == "__main__":
    key = jax.random.PRNGKey(0)
    k1, k2 = jax.random.split(key)

    # Case A: lane/sublane-aligned shapes (fast path, no spatial padding,
    # two parallel grid steps).
    B, C, H, W = 2, 4, 16, 128
    img_a = jax.random.normal(k1, (B, C, H, W), dtype=jnp.float32)
    blur_a = Blur(kernel_size_x=5, kernel_size_y=5, sigma=1.5)
    out_a = jax.block_until_ready(blur_a(img_a))
    ref_a = blur_reference(img_a, blur_a.kernel)
    assert out_a.shape == img_a.shape
    assert float(jnp.max(jnp.abs(out_a - ref_a))) < 1e-5

    # Case B: odd spatial sizes + ragged grid (exercises the zero-weight
    # alignment-padding path and the partial last block).
    img_b = jax.random.normal(k2, (1, 3, 20, 36), dtype=jnp.float32)
    blur_b = Blur(kernel_size_x=3, kernel_size_y=3, sigma=1.0)
    out_b = jax.block_until_ready(blur_b(img_b))
    ref_b = blur_reference(img_b, blur_b.kernel)
    assert out_b.shape == img_b.shape
    assert float(jnp.max(jnp.abs(out_b - ref_b))) < 1e-5

    print("KERNEL_OK")
</pallas_src>

<mosaic_0001>
module attributes {stable_mosaic.version = 11 : i64} {
  func.func @_blur_kernel(%arg0: i32, %arg1: memref<5x16x1xf32, #tpu.memory_space<vmem>>, %arg2: memref<5x1x128xf32, #tpu.memory_space<vmem>>, %arg3: memref<4x16x128xf32, #tpu.memory_space<vmem>>, %arg4: memref<4x16x128xf32, #tpu.memory_space<vmem>>) attributes {dimension_semantics = [#tpu.dimension_semantics<parallel>], iteration_bounds = array<i64: 2>, scalar_prefetch = 0 : i64, scratch_operands = 0 : i64, tpu.core_type = #tpu.core_type<tc>, window_params = [{pipeline_mode = #tpu.pipeline_mode<synchronous>, transform_indices = @transform_0, window_bounds = array<i64: 5, 16, 1>}, {pipeline_mode = #tpu.pipeline_mode<synchronous>, transform_indices = @transform_1, window_bounds = array<i64: 5, 1, 128>}, {transform_indices = @transform_2, window_bounds = array<i64: 4, 16, 128>}, {transform_indices = @transform_3, window_bounds = array<i64: 4, 16, 128>}]} {
    %c0 = arith.constant 0 : index
    %c0_0 = arith.constant 0 : index
    %c0_1 = arith.constant 0 : index
    %0 = vector.load %arg3[%c0, %c0_0, %c0_1] : memref<4x16x128xf32, #tpu.memory_space<vmem>>, vector<4x16x128xf32>
    %c2_i32 = arith.constant 2 : i32
    %1 = tpu.dynamic_rotate %0 by %c2_i32 dim 1 : vector<4x16x128xf32>, i32 -> vector<4x16x128xf32>
    %c0_2 = arith.constant 0 : index
    %c0_3 = arith.constant 0 : index
    %c0_4 = arith.constant 0 : index
    %2 = vector.load %arg1[%c0_2, %c0_3, %c0_4] : memref<5x16x1xf32, #tpu.memory_space<vmem>>, vector<1x16x1xf32>
    %3 = vector.shape_cast %2 : vector<1x16x1xf32> to vector<16x1xf32>
    %4 = vector.shape_cast %3 : vector<16x1xf32> to vector<1x16x1xf32>
    %5 = vector.broadcast %4 : vector<1x16x1xf32> to vector<4x16x128xf32>
    %6 = arith.mulf %5, %1 : vector<4x16x128xf32>
    %c1_i32 = arith.constant 1 : i32
    %7 = tpu.dynamic_rotate %0 by %c1_i32 dim 1 : vector<4x16x128xf32>, i32 -> vector<4x16x128xf32>
    %c1 = arith.constant 1 : index
    %c0_5 = arith.constant 0 : index
    %c0_6 = arith.constant 0 : index
    %8 = vector.load %arg1[%c1, %c0_5, %c0_6] : memref<5x16x1xf32, #tpu.memory_space<vmem>>, vector<1x16x1xf32>
    %9 = vector.shape_cast %8 : vector<1x16x1xf32> to vector<16x1xf32>
    %10 = vector.shape_cast %9 : vector<16x1xf32> to vector<1x16x1xf32>
    %11 = vector.broadcast %10 : vector<1x16x1xf32> to vector<4x16x128xf32>
    %12 = arith.mulf %11, %7 : vector<4x16x128xf32>
    %13 = arith.addf %6, %12 : vector<4x16x128xf32>
    %c2 = arith.constant 2 : index
    %c0_7 = arith.constant 0 : index
    %c0_8 = arith.constant 0 : index
    %14 = vector.load %arg1[%c2, %c0_7, %c0_8] : memref<5x16x1xf32, #tpu.memory_space<vmem>>, vector<1x16x1xf32>
    %15 = vector.shape_cast %14 : vector<1x16x1xf32> to vector<16x1xf32>
    %16 = vector.shape_cast %15 : vector<16x1xf32> to vector<1x16x1xf32>
    %17 = vector.broadcast %16 : vector<1x16x1xf32> to vector<4x16x128xf32>
    %18 = arith.mulf %17, %0 : vector<4x16x128xf32>
    %19 = arith.addf %13, %18 : vector<4x16x128xf32>
    %c15_i32 = arith.constant 15 : i32
    %20 = tpu.dynamic_rotate %0 by %c15_i32 dim 1 : vector<4x16x128xf32>, i32 -> vector<4x16x128xf32>
    %c3 = arith.constant 3 : index
    %c0_9 = arith.constant 0 : index
    %c0_10 = arith.constant 0 : index
    %21 = vector.load %arg1[%c3, %c0_9, %c0_10] : memref<5x16x1xf32, #tpu.memory_space<vmem>>, vector<1x16x1xf32>
    %22 = vector.shape_cast %21 : vector<1x16x1xf32> to vector<16x1xf32>
    %23 = vector.shape_cast %22 : vector<16x1xf32> to vector<1x16x1xf32>
    %24 = vector.broadcast %23 : vector<1x16x1xf32> to vector<4x16x128xf32>
    %25 = arith.mulf %24, %20 : vector<4x16x128xf32>
    %26 = arith.addf %19, %25 : vector<4x16x128xf32>
    %c14_i32 = arith.constant 14 : i32
    %27 = tpu.dynamic_rotate %0 by %c14_i32 dim 1 : vector<4x16x128xf32>, i32 -> vector<4x16x128xf32>
    %c4 = arith.constant 4 : index
    %c0_11 = arith.constant 0 : index
    %c0_12 = arith.constant 0 : index
    %28 = vector.load %arg1[%c4, %c0_11, %c0_12] : memref<5x16x1xf32, #tpu.memory_space<vmem>>, vector<1x16x1xf32>
    %29 = vector.shape_cast %28 : vector<1x16x1xf32> to vector<16x1xf32>
    %30 = vector.shape_cast %29 : vector<16x1xf32> to vector<1x16x1xf32>
    %31 = vector.broadcast %30 : vector<1x16x1xf32> to vector<4x16x128xf32>
    %32 = arith.mulf %31, %27 : vector<4x16x128xf32>
    %33 = arith.addf %26, %32 : vector<4x16x128xf32>
    %c2_i32_13 = arith.constant 2 : i32
    %34 = tpu.dynamic_rotate %33 by %c2_i32_13 dim 2 : vector<4x16x128xf32>, i32 -> vector<4x16x128xf32>
    %c0_14 = arith.constant 0 : index
    %c0_15 = arith.constant 0 : index
    %c0_16 = arith.constant 0 : index
    %35 = vector.load %arg2[%c0_14, %c0_15, %c0_16] : memref<5x1x128xf32, #tpu.memory_space<vmem>>, vector<1x1x128xf32>
    %36 = vector.shape_cast %35 : vector<1x1x128xf32> to vector<1x128xf32>
    %37 = vector.shape_cast %36 : vector<1x128xf32> to vector<1x1x128xf32>
    %38 = vector.broadcast %37 : vector<1x1x128xf32> to vector<4x16x128xf32>
    %39 = arith.mulf %38, %34 : vector<4x16x128xf32>
    %c1_i32_17 = arith.constant 1 : i32
    %40 = tpu.dynamic_rotate %33 by %c1_i32_17 dim 2 : vector<4x16x128xf32>, i32 -> vector<4x16x128xf32>
    %c1_18 = arith.constant 1 : index
    %c0_19 = arith.constant 0 : index
    %c0_20 = arith.constant 0 : index
    %41 = vector.load %arg2[%c1_18, %c0_19, %c0_20] : memref<5x1x128xf32, #tpu.memory_space<vmem>>, vector<1x1x128xf32>
    %42 = vector.shape_cast %41 : vector<1x1x128xf32> to vector<1x128xf32>
    %43 = vector.shape_cast %42 : vector<1x128xf32> to vector<1x1x128xf32>
    %44 = vector.broadcast %43 : vector<1x1x128xf32> to vector<4x16x128xf32>
    %45 = arith.mulf %44, %40 : vector<4x16x128xf32>
    %46 = arith.addf %39, %45 : vector<4x16x128xf32>
    %c2_21 = arith.constant 2 : index
    %c0_22 = arith.constant 0 : index
    %c0_23 = arith.constant 0 : index
    %47 = vector.load %arg2[%c2_21, %c0_22, %c0_23] : memref<5x1x128xf32, #tpu.memory_space<vmem>>, vector<1x1x128xf32>
    %48 = vector.shape_cast %47 : vector<1x1x128xf32> to vector<1x128xf32>
    %49 = vector.shape_cast %48 : vector<1x128xf32> to vector<1x1x128xf32>
    %50 = vector.broadcast %49 : vector<1x1x128xf32> to vector<4x16x128xf32>
    %51 = arith.mulf %50, %33 : vector<4x16x128xf32>
    %52 = arith.addf %46, %51 : vector<4x16x128xf32>
    %c127_i32 = arith.constant 127 : i32
    %53 = tpu.dynamic_rotate %33 by %c127_i32 dim 2 : vector<4x16x128xf32>, i32 -> vector<4x16x128xf32>
    %c3_24 = arith.constant 3 : index
    %c0_25 = arith.constant 0 : index
    %c0_26 = arith.constant 0 : index
    %54 = vector.load %arg2[%c3_24, %c0_25, %c0_26] : memref<5x1x128xf32, #tpu.memory_space<vmem>>, vector<1x1x128xf32>
    %55 = vector.shape_cast %54 : vector<1x1x128xf32> to vector<1x128xf32>
    %56 = vector.shape_cast %55 : vector<1x128xf32> to vector<1x1x128xf32>
    %57 = vector.broadcast %56 : vector<1x1x128xf32> to vector<4x16x128xf32>
    %58 = arith.mulf %57, %53 : vector<4x16x128xf32>
    %59 = arith.addf %52, %58 : vector<4x16x128xf32>
    %c126_i32 = arith.constant 126 : i32
    %60 = tpu.dynamic_rotate %33 by %c126_i32 dim 2 : vector<4x16x128xf32>, i32 -> vector<4x16x128xf32>
    %c4_27 = arith.constant 4 : index
    %c0_28 = arith.constant 0 : index
    %c0_29 = arith.constant 0 : index
    %61 = vector.load %arg2[%c4_27, %c0_28, %c0_29] : memref<5x1x128xf32, #tpu.memory_space<vmem>>, vector<1x1x128xf32>
    %62 = vector.shape_cast %61 : vector<1x1x128xf32> to vector<1x128xf32>
    %63 = vector.shape_cast %62 : vector<1x128xf32> to vector<1x1x128xf32>
    %64 = vector.broadcast %63 : vector<1x1x128xf32> to vector<4x16x128xf32>
    %65 = arith.mulf %64, %60 : vector<4x16x128xf32>
    %66 = arith.addf %59, %65 : vector<4x16x128xf32>
    %c0_30 = arith.constant 0 : index
    %c0_31 = arith.constant 0 : index
    %c0_32 = arith.constant 0 : index
    %67 = vector.load %arg4[%c0_30, %c0_31, %c0_32] : memref<4x16x128xf32, #tpu.memory_space<vmem>>, vector<4x16x128xf32>
    tpu.vector_store %arg4[%c0_30, %c0_31, %c0_32], %66 {strides = array<i32>} : memref<4x16x128xf32, #tpu.memory_space<vmem>>, vector<4x16x128xf32>,
    return
  }
  func.func @transform_0(%arg0: i32) -> (i32, i32, i32) {
    %c0_i32 = arith.constant 0 : i32
    %c0_i32_0 = arith.constant 0 : i32
    %c0_i32_1 = arith.constant 0 : i32
    %c0_i32_2 = arith.constant 0 : i32
    return %c0_i32, %c0_i32_0, %c0_i32_1 : i32, i32, i32
  }
  func.func @transform_1(%arg0: i32) -> (i32, i32, i32) {
    %c0_i32 = arith.constant 0 : i32
    %c0_i32_0 = arith.constant 0 : i32
    %c0_i32_1 = arith.constant 0 : i32
    %c0_i32_2 = arith.constant 0 : i32
    return %c0_i32, %c0_i32_0, %c0_i32_1 : i32, i32, i32
  }
  func.func @transform_2(%arg0: i32) -> (i32, i32, i32) {
    %c0_i32 = arith.constant 0 : i32
    %c0_i32_0 = arith.constant 0 : i32
    %c0_i32_1 = arith.constant 0 : i32
    return %arg0, %c0_i32, %c0_i32_0 : i32, i32, i32
  }
  func.func @transform_3(%arg0: i32) -> (i32, i32, i32) {
    %c0_i32 = arith.constant 0 : i32
    %c0_i32_0 = arith.constant 0 : i32
    %c0_i32_1 = arith.constant 0 : i32
    return %arg0, %c0_i32, %c0_i32_0 : i32, i32, i32
  }
}

</mosaic_0001>

<llo_original>
// kernel: tpu_custom_call.1
$region0: #{tpu_custom_call.1}
  #allocation0 [shape = 'u32[]', space=smem, size = 0x4, offset = 0x4, fixed_abs, tag = 'smem constant byte address 0x4 - core index']
  #allocation1 [shape = 'u32[144,128]{1,0:T(1,128)}', space=vmem, size = 0x12000, scoped, tag = 'internal scratch']
  %s0 = inlined_call_operand.vmem [shape: f32[5,16,1], index: 0, kind: input, shape index: {}]
  %s1 = inlined_call_operand.vmem [shape: f32[5,1,128], index: 1, kind: input, shape index: {}]
  %s2 = inlined_call_operand.hbm [shape: f32[8,16,128], index: 2, kind: input, shape index: {}]
  %s3 = inlined_call_operand.hbm [shape: f32[8,16,128], index: 3, kind: output, shape index: {}]
  %s4 = sld [smem:[#allocation0]]
  $region49: #{tpu_custom_call.1} parent=0
    _
  %s6 = ssub.s32 1, %s4
  %s7 = scalar_select 0, %s6, %s4
  $region1: #{tpu_custom_call.1} parent=0
    #allocation2 [shape = 'u8[65536]{0}', space=vmem, size = 0x10000, scoped, tag = 'input window, operand 2']
    #allocation3 [shape = 's32[2]{0}', space=sflag, size = 0x8, scoped, tag = 'scoped memory for tpu_custom_call.1']
    #allocation4 [shape = 's32[2]{0}', space=sflag, size = 0x8, scoped, tag = 'scoped memory for tpu_custom_call.1']
    #allocation5 [shape = 'u8[65536]{0}', space=vmem, size = 0x10000, scoped, tag = 'output window, operand 0']
    %8 = vsyncpa [#allocation3], 0
    %s9 = scalar_lea.sflag [#allocation3], 1
    %10 = vsyncpa %s9, 0
    %11 = vsyncpa [#allocation4], 0
    %s12 = scalar_lea.sflag [#allocation4], 1
    %13 = vsyncpa %s12, 0
    loop: start=0, step=1, limit=4
    $region2: #{tpu_custom_call.1} parent=1 // loop_pre_header
      _
    $region3: #{tpu_custom_call.1} parent=1 // loop_header
      %s15 = sphi 0, %s19
      %p16 = scmp.ge.s32.totalorder %s15, 4
      %s23 = sphi 0, %s23
      %s25 = sphi 0, %s23
      %s26 = sphi 0, %s25
      %s40 = sphi 0, %s26
      %s44 = sphi 0, %s44
      %s46 = sphi 0, %s44
      %s47 = sphi 0, %s46
      %s61 = sphi 0, %s47
      %s67 = sphi 0, %s69
      %s70 = sphi 0, %s67
      %s71 = sphi 0, %s70
      %s87 = sphi 0, %s71
      %s93 = sphi 0, %s95
      %s96 = sphi 0, %s93
      %s97 = sphi 0, %s96
      %s113 = sphi 0, %s97
    $region4: #{tpu_custom_call.1} parent=1 // loop_header_branch
      %18 = sbr.rel (%p16) target = $region8
    $region5: #{tpu_custom_call.1} parent=1 // loop_body
      %s20 = ssub.s32 %s15, 1
      %s21 = ssub.s32 %s15, 2
      %s22 = sadd.s32 %s15, 1
      %s24 = sadd.s32 %s23, 1
      %p27 = scmp.eq.s32.totalorder %s15, 1
      %p28 = scmp.ne.s32.totalorder %s23, %s25
      %p29 = scmp.eq.s32.totalorder %s15, 0
      %p30 = por %p28, %p29
      %p31 = scmp.ne.s32.totalorder %s23, %s25
      %p32 = scmp.eq.s32.totalorder %s20, 1
      %p33 = por %p31, %p32
      %p34 = scmp.ne.s32.totalorder %s25, %s26
      %p35 = scmp.eq.s32.totalorder %s20, 0
      %p36 = por %p34, %p35
      %p37 = scmp.ne.s32.totalorder %s25, %s26
      %p38 = scmp.eq.s32.totalorder %s21, 1
      %p39 = por %p37, %p38
      %p41 = scmp.ne.s32.totalorder %s26, %s40
      %p42 = scmp.eq.s32.totalorder %s21, 0
      %p43 = por %p41, %p42
      %s45 = sadd.s32 %s44, 1
      %p48 = scmp.eq.s32.totalorder %s15, 1
      %p49 = scmp.ne.s32.totalorder %s44, %s46
      %p50 = scmp.eq.s32.totalorder %s15, 0
      %p51 = por %p49, %p50
      %p52 = scmp.ne.s32.totalorder %s44, %s46
      %p53 = scmp.eq.s32.totalorder %s20, 1
      %p54 = por %p52, %p53
      %p55 = scmp.ne.s32.totalorder %s46, %s47
      %p56 = scmp.eq.s32.totalorder %s20, 0
      %p57 = por %p55, %p56
      %p58 = scmp.ne.s32.totalorder %s46, %s47
      %p59 = scmp.eq.s32.totalorder %s21, 1
      %p60 = por %p58, %p59
      %p62 = scmp.ne.s32.totalorder %s47, %s61
      %p63 = scmp.eq.s32.totalorder %s21, 0
      %p64 = por %p62, %p63
      %s65 = ssub.s32 %s15, %s22
      %p66 = scmp.eq.s32.totalorder %s65, 0
      %s68 = sadd.s32 %s67, 1
      %s69 = scalar_select %p66, %s67, %s68
      %p72 = pneg %p66
      %p73 = scmp.eq.s32.totalorder %s15, 1
      %p74 = por %p72, %p73
      %p75 = scmp.ne.s32.totalorder %s67, %s70
      %p76 = scmp.eq.s32.totalorder %s15, 0
      %p77 = por %p75, %p76
      %p78 = scmp.ne.s32.totalorder %s67, %s70
      %p79 = scmp.eq.s32.totalorder %s20, 1
      %p80 = por %p78, %p79
      %p81 = scmp.ne.s32.totalorder %s70, %s71
      %p82 = scmp.eq.s32.totalorder %s20, 0
      %p83 = por %p81, %p82
      %p84 = scmp.ne.s32.totalorder %s70, %s71
      %p85 = scmp.eq.s32.totalorder %s21, 1
      %p86 = por %p84, %p85
      %p88 = scmp.ne.s32.totalorder %s71, %s87
      %p89 = scmp.eq.s32.totalorder %s21, 0
      %p90 = por %p88, %p89
      %s91 = ssub.s32 %s15, %s22
      %p92 = scmp.eq.s32.totalorder %s91, 0
      %s94 = sadd.s32 %s93, 1
      %s95 = scalar_select %p92, %s93, %s94
      %p98 = pneg %p92
      %p99 = scmp.eq.s32.totalorder %s15, 1
      %p100 = por %p98, %p99
      %p101 = scmp.ne.s32.totalorder %s93, %s96
      %p102 = scmp.eq.s32.totalorder %s15, 0
      %p103 = por %p101, %p102
      %p104 = scmp.ne.s32.totalorder %s93, %s96
      %p105 = scmp.eq.s32.totalorder %s20, 1
      %p106 = por %p104, %p105
      %p107 = scmp.ne.s32.totalorder %s96, %s97
      %p108 = scmp.eq.s32.totalorder %s20, 0
      %p109 = por %p107, %p108
      %p110 = scmp.ne.s32.totalorder %s96, %s97
      %p111 = scmp.eq.s32.totalorder %s21, 1
      %p112 = por %p110, %p111
      %p114 = scmp.ne.s32.totalorder %s97, %s113
      %p115 = scmp.eq.s32.totalorder %s21, 0
      %p116 = por %p114, %p115
      %p117 = scmp.le.s32.totalorder 1, %s15
      %p118 = scmp.lt.s32.totalorder %s15, 3
      %p119 = pnand %p117, %p118
      %p120 = pneg %p119
      // Predicated region
      $region9: #{tpu_custom_call.1} parent=5 // pred_check
        _
      $region10: #{tpu_custom_call.1} parent=5 // pred_check_branch
        %122 = sbr.rel (%p119) target = $region12
      $region11: #{tpu_custom_call.1} parent=5 // pred_region
        %s123 = ssub.s32 %s15, 1
        // Predicated region
        $region13: #{tpu_custom_call.1} parent=11 // pred_check
          %p124 = pneg %p36
        $region14: #{tpu_custom_call.1} parent=11 // pred_check_branch
          %126 = sbr.rel (%p124) target = $region16
        $region15: #{tpu_custom_call.1} parent=11 // pred_region
          _
        $region16: #{tpu_custom_call.1} parent=11 // pred_fallthru
          _
        // Predicated region
        $region17: #{tpu_custom_call.1} parent=11 // pred_check
          %p127 = pneg %p57
        $region18: #{tpu_custom_call.1} parent=11 // pred_check_branch
          %129 = sbr.rel (%p127) target = $region20
        $region19: #{tpu_custom_call.1} parent=11 // pred_region
          _
        $region20: #{tpu_custom_call.1} parent=11 // pred_fallthru
          _
      $region12: #{tpu_custom_call.1} parent=5 // pred_fallthru
        _
      %p130 = scmp.lt.s32.totalorder %s15, 2
      // Predicated region
      $region21: #{tpu_custom_call.1} parent=5 // pred_check
        %p131 = pneg %p130
      $region22: #{tpu_custom_call.1} parent=5 // pred_check_branch
        %133 = sbr.rel (%p131) target = $region24
      $region23: #{tpu_custom_call.1} parent=5 // pred_region
        // Predicated region
        $region25: #{tpu_custom_call.1} parent=23 // pred_check
          %p134 = pneg %p77
        $region26: #{tpu_custom_call.1} parent=23 // pred_check_branch
          %136 = sbr.rel (%p134) target = $region28
        $region27: #{tpu_custom_call.1} parent=23 // pred_region
          %s137 = sand.u32 %s67, 1
          %s138 = scalar_lea.sflag [#allocation3], %s137
          %s139 = sand.u32 %s67, 1
          %s140 = smul.addr %s139, 64
          %s141 = scalar_lea.vmem [#allocation2], %s140
          %s142 = smul.u32 4, %s15
          %s144 = ssub.s32 1024, 1024
          %145 = vsyncadd %s138, %s144
          %s146 = smul.addr %s142, 2
          %s147 = smul.addr %s146, 128
          %s148 = scalar_lea.hbm %s2, %s147
          %s149 = sshll.u32 %s141, 4
          %s150 = int_to_ptr.vmem [resolvable:$true] %s149
          %155 = dma.hbm_to_vmem [thread:$0]  %s148, 1024, %s150, %s138, 128, 128, 8
        $region28: #{tpu_custom_call.1} parent=23 // pred_fallthru
          _
      $region24: #{tpu_custom_call.1} parent=5 // pred_fallthru
        _
      %p156 = scmp.le.s32.totalorder 1, %s15
      %p157 = scmp.lt.s32.totalorder %s15, 3
      %p158 = pnand %p156, %p157
      %p159 = pneg %p158
      // Predicated region
      $region29: #{tpu_custom_call.1} parent=5 // pred_check
        _
      $region30: #{tpu_custom_call.1} parent=5 // pred_check_branch
        %161 = sbr.rel (%p158) target = $region32
      $region31: #{tpu_custom_call.1} parent=5 // pred_region
        %s162 = ssub.s32 %s15, 1
        %s163 = sand.u32 %s70, 1
        %s164 = scalar_lea.sflag [#allocation3], %s163
        %s165 = sand.u32 %s70, 1
        %s166 = smul.addr %s165, 64
        %s167 = scalar_lea.vmem [#allocation2], %s166
        // Predicated region
        $region33: #{tpu_custom_call.1} parent=31 // pred_check
          %p168 = pneg %p83
        $region34: #{tpu_custom_call.1} parent=31 // pred_check_branch
          %170 = sbr.rel (%p168) target = $region36
        $region35: #{tpu_custom_call.1} parent=31 // pred_region
          %171 = dma.done %s164, 1024
        $region36: #{tpu_custom_call.1} parent=31 // pred_fallthru
          _
        %p172 = pneg %p36
        %p173 = pneg %p33
        %p174 = pneg %p57
        %p175 = pneg %p54
        %s176 = sand.u32 %s70, 1
        %s177 = scalar_lea.sflag [#allocation3], %s176
        %s178 = sand.u32 %s70, 1
        %s179 = smul.addr %s178, 64
        %s180 = scalar_lea.vmem [#allocation2], %s179
        %p181 = pneg %p83
        %p182 = pneg %p80
        %p183 = pneg %p109
        %p184 = pneg %p106
        %s185 = sand.u32 %s96, 1
        %s186 = scalar_lea.sflag [#allocation4], %s185
        %s187 = sand.u32 %s96, 1
        %s188 = smul.addr %s187, 64
        %s189 = scalar_lea.vmem [#allocation5], %s188
        %s190 = smul.u32 4, %s20
        %s191 = smul.u32 4, %s20
        %v192 = vld [vmem:[%s167] sm:$0xff]
        %v193 = vld [vmem:[%s167 + $0x8] sm:$0xff]
        %v194 = vld [vmem:[%s167 + $0x10] sm:$0xff]
        %v195 = vld [vmem:[%s167 + $0x18] sm:$0xff]
        %v196 = vld [vmem:[%s167 + $0x20] sm:$0xff]
        %v197 = vld [vmem:[%s167 + $0x28] sm:$0xff]
        %v198 = vld [vmem:[%s167 + $0x30] sm:$0xff]
        %v199 = vld [vmem:[%s167 + $0x38] sm:$0xff]
        %v200 = vrot.slane %v192, 6
        %v201 = vrot.slane %v194, 6
        %v202 = vrot.slane %v196, 6
        %v203 = vrot.slane %v198, 6
        %v204 = vrot.slane %v193, 6
        %v205 = vrot.slane %v195, 6
        %v206 = vrot.slane %v197, 6
        %v207 = vrot.slane %v199, 6
        %v208 = vlaneseq
        %v209 = vshrl.u32 %v208, 7
        %vm210 = vcmp.lt.s32.totalorder %v209, 2
        %v211 = vsel %vm210, %v200, %v204
        %v212 = vsel %vm210, %v201, %v205
        %v213 = vsel %vm210, %v202, %v206
        %v214 = vsel %vm210, %v203, %v207
        %v215 = vsel %vm210, %v204, %v200
        %v216 = vsel %vm210, %v205, %v201
        %v217 = vsel %vm210, %v206, %v202
        %v218 = vsel %vm210, %v207, %v203
        %v219 = vld [vmem:[%s0] sm:$0xff]
        %v220 = vld [vmem:[%s0 + $0x8] sm:$0xff]
        %222 = vset.pattern.permute.xlu0 0
        %223 = vperm.xlu0 %222, %v219
        %v224 = vpop.permute.xlu0 %223
        %227 = vset.pattern.permute.xlu0 0
        %228 = vperm.xlu0 %227, %v220
        %v229 = vpop.permute.xlu0 %228
        %v231 = vmul.f32 %v224, %v215
        %v232 = vmul.f32 %v229, %v211
        %v233 = vmul.f32 %v224, %v216
        %v234 = vmul.f32 %v229, %v212
        %v235 = vmul.f32 %v224, %v217
        %v236 = vmul.f32 %v229, %v213
        %v237 = vmul.f32 %v224, %v218
        %v238 = vmul.f32 %v229, %v214
        %v239 = vrot.slane %v192, 7
        %v240 = vrot.slane %v194, 7
        %v241 = vrot.slane %v196, 7
        %v242 = vrot.slane %v198, 7
        %v243 = vrot.slane %v193, 7
        %v244 = vrot.slane %v195, 7
        %v245 = vrot.slane %v197, 7
        %v246 = vrot.slane %v199, 7
        %vm247 = vcmp.lt.s32.totalorder %v209, 1
        %v248 = vsel %vm247, %v239, %v243
        %v249 = vsel %vm247, %v240, %v244
        %v250 = vsel %vm247, %v241, %v245
        %v251 = vsel %vm247, %v242, %v246
        %v252 = vsel %vm247, %v243, %v239
        %v253 = vsel %vm247, %v244, %v240
        %v254 = vsel %vm247, %v245, %v241
        %v255 = vsel %vm247, %v246, %v242
        %s256 = scalar_lea.vmem %s0, 16
        %v257 = vld [vmem:[%s256] sm:$0xff]
        %v258 = vld [vmem:[%s256 + $0x8] sm:$0xff]
        %260 = vset.pattern.permute.xlu0 0
        %261 = vperm.xlu0 %260, %v257
        %v262 = vpop.permute.xlu0 %261
        %265 = vset.pattern.permute.xlu0 0
        %266 = vperm.xlu0 %265, %v258
        %v267 = vpop.permute.xlu0 %266
        %v269 = vmul.f32 %v262, %v252
        %v270 = vmul.f32 %v267, %v248
        %v271 = vmul.f32 %v262, %v253
        %v272 = vmul.f32 %v267, %v249
        %v273 = vmul.f32 %v262, %v254
        %v274 = vmul.f32 %v267, %v250
        %v275 = vmul.f32 %v262, %v255
        %v276 = vmul.f32 %v267, %v251
        %v277 = vadd.f32 %v231, %v269
        %v278 = vadd.f32 %v232, %v270
        %v279 = vadd.f32 %v233, %v271
        %v280 = vadd.f32 %v234, %v272
        %v281 = vadd.f32 %v235, %v273
        %v282 = vadd.f32 %v236, %v274
        %v283 = vadd.f32 %v237, %v275
        %v284 = vadd.f32 %v238, %v276
        %s285 = scalar_lea.vmem %s0, 32
        %v286 = vld [vmem:[%s285] sm:$0xff]
        %v287 = vld [vmem:[%s285 + $0x8] sm:$0xff]
        %289 = vset.pattern.permute.xlu0 0
        %290 = vperm.xlu0 %289, %v286
        %v291 = vpop.permute.xlu0 %290
        %294 = vset.pattern.permute.xlu0 0
        %295 = vperm.xlu0 %294, %v287
        %v296 = vpop.permute.xlu0 %295
        %v298 = vmul.f32 %v291, %v192
        %v299 = vmul.f32 %v296, %v193
        %v300 = vmul.f32 %v291, %v194
        %v301 = vmul.f32 %v296, %v195
        %v302 = vmul.f32 %v291, %v196
        %v303 = vmul.f32 %v296, %v197
        %v304 = vmul.f32 %v291, %v198
        %v305 = vmul.f32 %v296, %v199
        %v306 = vadd.f32 %v277, %v298
        %v307 = vadd.f32 %v278, %v299
        %v308 = vadd.f32 %v279, %v300
        %v309 = vadd.f32 %v280, %v301
        %v310 = vadd.f32 %v281, %v302
        %v311 = vadd.f32 %v282, %v303
        %v312 = vadd.f32 %v283, %v304
        %v313 = vadd.f32 %v284, %v305
        %v314 = vrot.slane %v192, 1
        %v315 = vrot.slane %v194, 1
        %v316 = vrot.slane %v196, 1
        %v317 = vrot.slane %v198, 1
        %v318 = vrot.slane %v193, 1
        %v319 = vrot.slane %v195, 1
        %v320 = vrot.slane %v197, 1
        %v321 = vrot.slane %v199, 1
        %vm322 = vcmp.lt.s32.totalorder %v209, 7
        %v323 = vsel %vm322, %v314, %v318
        %v324 = vsel %vm322, %v315, %v319
        %v325 = vsel %vm322, %v316, %v320
        %v326 = vsel %vm322, %v317, %v321
        %v327 = vsel %vm322, %v318, %v314
        %v328 = vsel %vm322, %v319, %v315
        %v329 = vsel %vm322, %v320, %v316
        %v330 = vsel %vm322, %v321, %v317
        %s331 = scalar_lea.vmem %s0, 48
        %v332 = vld [vmem:[%s331] sm:$0xff]
        %v333 = vld [vmem:[%s331 + $0x8] sm:$0xff]
        %335 = vset.pattern.permute.xlu0 0
        %336 = vperm.xlu0 %335, %v332
        %v337 = vpop.permute.xlu0 %336
        %340 = vset.pattern.permute.xlu0 0
        %341 = vperm.xlu0 %340, %v333
        %v342 = vpop.permute.xlu0 %341
        %v344 = vmul.f32 %v337, %v323
        %v345 = vmul.f32 %v342, %v327
        %v346 = vmul.f32 %v337, %v324
        %v347 = vmul.f32 %v342, %v328
        %v348 = vmul.f32 %v337, %v325
        %v349 = vmul.f32 %v342, %v329
        %v350 = vmul.f32 %v337, %v326
        %v351 = vmul.f32 %v342, %v330
        %v352 = vadd.f32 %v306, %v344
        %v353 = vadd.f32 %v307, %v345
        %v354 = vadd.f32 %v308, %v346
        %v355 = vadd.f32 %v309, %v347
        %v356 = vadd.f32 %v310, %v348
        %v357 = vadd.f32 %v311, %v349
        %v358 = vadd.f32 %v312, %v350
        %v359 = vadd.f32 %v313, %v351
        %v360 = vrot.slane %v192, 2
        %v361 = vrot.slane %v194, 2
        %v362 = vrot.slane %v196, 2
        %v363 = vrot.slane %v198, 2
        %v364 = vrot.slane %v193, 2
        %v365 = vrot.slane %v195, 2
        %v366 = vrot.slane %v197, 2
        %v367 = vrot.slane %v199, 2
        %vm368 = vcmp.lt.s32.totalorder %v209, 6
        %v369 = vsel %vm368, %v360, %v364
        %v370 = vsel %vm368, %v361, %v365
        %v371 = vsel %vm368, %v362, %v366
        %v372 = vsel %vm368, %v363, %v367
        %v373 = vsel %vm368, %v364, %v360
        %v374 = vsel %vm368, %v365, %v361
        %v375 = vsel %vm368, %v366, %v362
        %v376 = vsel %vm368, %v367, %v363
        %s377 = scalar_lea.vmem %s0, 64
        %v378 = vld [vmem:[%s377] sm:$0xff]
        %v379 = vld [vmem:[%s377 + $0x8] sm:$0xff]
        %381 = vset.pattern.permute.xlu0 0
        %382 = vperm.xlu0 %381, %v378
        %v383 = vpop.permute.xlu0 %382
        %386 = vset.pattern.permute.xlu0 0
        %387 = vperm.xlu0 %386, %v379
        %v388 = vpop.permute.xlu0 %387
        %v390 = vmul.f32 %v383, %v369
        %v391 = vmul.f32 %v388, %v373
        %v392 = vmul.f32 %v383, %v370
        %v393 = vmul.f32 %v388, %v374
        %v394 = vmul.f32 %v383, %v371
        %v395 = vmul.f32 %v388, %v375
        %v396 = vmul.f32 %v383, %v372
        %v397 = vmul.f32 %v388, %v376
        %v398 = vadd.f32 %v352, %v390
        %v399 = vadd.f32 %v353, %v391
        %v400 = vadd.f32 %v354, %v392
        %v401 = vadd.f32 %v355, %v393
        %v402 = vadd.f32 %v356, %v394
        %v403 = vadd.f32 %v357, %v395
        %v404 = vadd.f32 %v358, %v396
        %v405 = vadd.f32 %v359, %v397
        %406 = vrot.lane.b32.xlu0 %v398, 2
        %v407 = vpop.permute.xlu0 %406
        %408 = vrot.lane.b32.xlu0 %v399, 2
        %v409 = vpop.permute.xlu0 %408
        %410 = vrot.lane.b32.xlu0 %v400, 2
        %v411 = vpop.permute.xlu0 %410
        %412 = vrot.lane.b32.xlu0 %v401, 2
        %v413 = vpop.permute.xlu0 %412
        %414 = vrot.lane.b32.xlu0 %v402, 2
        %v415 = vpop.permute.xlu0 %414
        %416 = vrot.lane.b32.xlu0 %v403, 2
        %v417 = vpop.permute.xlu0 %416
        %418 = vrot.lane.b32.xlu0 %v404, 2
        %v419 = vpop.permute.xlu0 %418
        %420 = vrot.lane.b32.xlu0 %v405, 2
        %v421 = vpop.permute.xlu0 %420
        %v422 = vld [vmem:[%s1] sm:$0x1]
        %v424 = vlaneseq
        %v425 = vshrl.u32 %v424, 7
        %v426 = vsub.s32 0, %v425
        %v427 = vrot.slane %v422, %v426
        %v429 = vmul.f32 %v427, %v407
        %v430 = vmul.f32 %v427, %v409
        %v431 = vmul.f32 %v427, %v411
        %v432 = vmul.f32 %v427, %v413
        %v433 = vmul.f32 %v427, %v415
        %v434 = vmul.f32 %v427, %v417
        %v435 = vmul.f32 %v427, %v419
        %v436 = vmul.f32 %v427, %v421
        %437 = vrot.lane.b32.xlu0 %v398, 1
        %v438 = vpop.permute.xlu0 %437
        %439 = vrot.lane.b32.xlu0 %v399, 1
        %v440 = vpop.permute.xlu0 %439
        %441 = vrot.lane.b32.xlu0 %v400, 1
        %v442 = vpop.permute.xlu0 %441
        %443 = vrot.lane.b32.xlu0 %v401, 1
        %v444 = vpop.permute.xlu0 %443
        %445 = vrot.lane.b32.xlu0 %v402, 1
        %v446 = vpop.permute.xlu0 %445
        %447 = vrot.lane.b32.xlu0 %v403, 1
        %v448 = vpop.permute.xlu0 %447
        %449 = vrot.lane.b32.xlu0 %v404, 1
        %v450 = vpop.permute.xlu0 %449
        %451 = vrot.lane.b32.xlu0 %v405, 1
        %v452 = vpop.permute.xlu0 %451
        %s453 = scalar_lea.vmem %s1, 1
        %v454 = vld [vmem:[%s453] sm:$0x1]
        %v456 = vlaneseq
        %v457 = vshrl.u32 %v456, 7
        %v458 = vsub.s32 0, %v457
        %v459 = vrot.slane %v454, %v458
        %v461 = vmul.f32 %v459, %v438
        %v462 = vmul.f32 %v459, %v440
        %v463 = vmul.f32 %v459, %v442
        %v464 = vmul.f32 %v459, %v444
        %v465 = vmul.f32 %v459, %v446
        %v466 = vmul.f32 %v459, %v448
        %v467 = vmul.f32 %v459, %v450
        %v468 = vmul.f32 %v459, %v452
        %v469 = vadd.f32 %v429, %v461
        %v470 = vadd.f32 %v430, %v462
        %v471 = vadd.f32 %v431, %v463
        %v472 = vadd.f32 %v432, %v464
        %v473 = vadd.f32 %v433, %v465
        %v474 = vadd.f32 %v434, %v466
        %v475 = vadd.f32 %v435, %v467
        %v476 = vadd.f32 %v436, %v468
        %s477 = scalar_lea.vmem %s1, 2
        %v478 = vld [vmem:[%s477] sm:$0x1]
        %v480 = vlaneseq
        %v481 = vshrl.u32 %v480, 7
        %v482 = vsub.s32 0, %v481
        %v483 = vrot.slane %v478, %v482
        %v485 = vmul.f32 %v483, %v398
        %v486 = vmul.f32 %v483, %v399
        %v487 = vmul.f32 %v483, %v400
        %v488 = vmul.f32 %v483, %v401
        %v489 = vmul.f32 %v483, %v402
        %v490 = vmul.f32 %v483, %v403
        %v491 = vmul.f32 %v483, %v404
        %v492 = vmul.f32 %v483, %v405
        %v493 = vadd.f32 %v469, %v485
        %v494 = vadd.f32 %v470, %v486
        %v495 = vadd.f32 %v471, %v487
        %v496 = vadd.f32 %v472, %v488
        %v497 = vadd.f32 %v473, %v489
        %v498 = vadd.f32 %v474, %v490
        %v499 = vadd.f32 %v475, %v491
        %v500 = vadd.f32 %v476, %v492
        %501 = vrot.lane.b32.xlu0 %v398, 127
        %v502 = vpop.permute.xlu0 %501
        %503 = vrot.lane.b32.xlu0 %v399, 127
        %v504 = vpop.permute.xlu0 %503
        %505 = vrot.lane.b32.xlu0 %v400, 127
        %v506 = vpop.permute.xlu0 %505
        %507 = vrot.lane.b32.xlu0 %v401, 127
        %v508 = vpop.permute.xlu0 %507
        %509 = vrot.lane.b32.xlu0 %v402, 127
        %v510 = vpop.permute.xlu0 %509
        %511 = vrot.lane.b32.xlu0 %v403, 127
        %v512 = vpop.permute.xlu0 %511
        %513 = vrot.lane.b32.xlu0 %v404, 127
        %v514 = vpop.permute.xlu0 %513
        %515 = vrot.lane.b32.xlu0 %v405, 127
        %v516 = vpop.permute.xlu0 %515
        %s517 = scalar_lea.vmem %s1, 3
        %v518 = vld [vmem:[%s517] sm:$0x1]
        %v520 = vlaneseq
        %v521 = vshrl.u32 %v520, 7
        %v522 = vsub.s32 0, %v521
        %v523 = vrot.slane %v518, %v522
        %v525 = vmul.f32 %v523, %v502
        %v526 = vmul.f32 %v523, %v504
        %v527 = vmul.f32 %v523, %v506
        %v528 = vmul.f32 %v523, %v508
        %v529 = vmul.f32 %v523, %v510
        %v530 = vmul.f32 %v523, %v512
        %v531 = vmul.f32 %v523, %v514
        %v532 = vmul.f32 %v523, %v516
        %v533 = vadd.f32 %v493, %v525
        %v534 = vadd.f32 %v494, %v526
        %v535 = vadd.f32 %v495, %v527
        %v536 = vadd.f32 %v496, %v528
        %v537 = vadd.f32 %v497, %v529
        %v538 = vadd.f32 %v498, %v530
        %v539 = vadd.f32 %v499, %v531
        %v540 = vadd.f32 %v500, %v532
        %541 = vrot.lane.b32.xlu0 %v398, 126
        %v542 = vpop.permute.xlu0 %541
        %543 = vrot.lane.b32.xlu0 %v399, 126
        %v544 = vpop.permute.xlu0 %543
        %545 = vrot.lane.b32.xlu0 %v400, 126
        %v546 = vpop.permute.xlu0 %545
        %547 = vrot.lane.b32.xlu0 %v401, 126
        %v548 = vpop.permute.xlu0 %547
        %549 = vrot.lane.b32.xlu0 %v402, 126
        %v550 = vpop.permute.xlu0 %549
        %551 = vrot.lane.b32.xlu0 %v403, 126
        %v552 = vpop.permute.xlu0 %551
        %553 = vrot.lane.b32.xlu0 %v404, 126
        %v554 = vpop.permute.xlu0 %553
        %555 = vrot.lane.b32.xlu0 %v405, 126
        %v556 = vpop.permute.xlu0 %555
        %s557 = scalar_lea.vmem %s1, 4
        %v558 = vld [vmem:[%s557] sm:$0x1]
        %v560 = vlaneseq
        %v561 = vshrl.u32 %v560, 7
        %v562 = vsub.s32 0, %v561
        %v563 = vrot.slane %v558, %v562
        %v565 = vmul.f32 %v563, %v542
        %v566 = vmul.f32 %v563, %v544
        %v567 = vmul.f32 %v563, %v546
        %v568 = vmul.f32 %v563, %v548
        %v569 = vmul.f32 %v563, %v550
        %v570 = vmul.f32 %v563, %v552
        %v571 = vmul.f32 %v563, %v554
        %v572 = vmul.f32 %v563, %v556
        %v573 = vadd.f32 %v533, %v565
        %v574 = vadd.f32 %v534, %v566
        %v575 = vadd.f32 %v535, %v567
        %v576 = vadd.f32 %v536, %v568
        %v577 = vadd.f32 %v537, %v569
        %v578 = vadd.f32 %v538, %v570
        %v579 = vadd.f32 %v539, %v571
        %v580 = vadd.f32 %v540, %v572
        %581 = vst [vmem:[%s189] sm:$0xff] %v573
        %582 = vst [vmem:[%s189 + $0x8] sm:$0xff] %v574
        %583 = vst [vmem:[%s189 + $0x10] sm:$0xff] %v575
        %584 = vst [vmem:[%s189 + $0x18] sm:$0xff] %v576
        %585 = vst [vmem:[%s189 + $0x20] sm:$0xff] %v577
        %586 = vst [vmem:[%s189 + $0x28] sm:$0xff] %v578
        %587 = vst [vmem:[%s189 + $0x30] sm:$0xff] %v579
        %588 = vst [vmem:[%s189 + $0x38] sm:$0xff] %v580
        %s589 = sand.u32 %s96, 1
        %s590 = scalar_lea.sflag [#allocation4], %s589
        %s591 = sand.u32 %s96, 1
        %s592 = smul.addr %s591, 64
        %s593 = scalar_lea.vmem [#allocation5], %s592
        // Predicated region
        $region37: #{tpu_custom_call.1} parent=31 // pred_check
          %p594 = pneg %p106
        $region38: #{tpu_custom_call.1} parent=31 // pred_check_branch
          %596 = sbr.rel (%p594) target = $region40
        $region39: #{tpu_custom_call.1} parent=31 // pred_region
          %s597 = smul.u32 4, %s20
          %s599 = ssub.s32 1024, 1024
          %600 = vsyncadd %s590, %s599
          %s601 = smul.addr %s597, 2
          %s602 = smul.addr %s601, 128
          %s603 = scalar_lea.hbm %s3, %s602
          %s604 = sshll.u32 %s593, 4
          %s605 = int_to_ptr.vmem [resolvable:$true] %s604
          %610 = dma.vmem_to_hbm [thread:$0]  %s605, 1024, %s603, %s590, 128, 128, 8
        $region40: #{tpu_custom_call.1} parent=31 // pred_fallthru
          _
      $region32: #{tpu_custom_call.1} parent=5 // pred_fallthru
        _
      %p611 = scmp.le.s32.totalorder 2, %s15
      // Predicated region
      $region41: #{tpu_custom_call.1} parent=5 // pred_check
        %p612 = pneg %p611
      $region42: #{tpu_custom_call.1} parent=5 // pred_check_branch
        %614 = sbr.rel (%p612) target = $region44
      $region43: #{tpu_custom_call.1} parent=5 // pred_region
        %s615 = ssub.s32 %s15, 2
        // Predicated region
        $region45: #{tpu_custom_call.1} parent=43 // pred_check
          %p616 = pneg %p112
        $region46: #{tpu_custom_call.1} parent=43 // pred_check_branch
          %618 = sbr.rel (%p616) target = $region48
        $region47: #{tpu_custom_call.1} parent=43 // pred_region
          %s619 = sand.u32 %s97, 1
          %s620 = scalar_lea.sflag [#allocation4], %s619
          %s621 = sand.u32 %s97, 1
          %s622 = smul.addr %s621, 64
          %s623 = scalar_lea.vmem [#allocation5], %s622
          %624 = dma.done %s620, 1024
        $region48: #{tpu_custom_call.1} parent=43 // pred_fallthru
          _
      $region44: #{tpu_custom_call.1} parent=5 // pred_fallthru
        _
    $region6: #{tpu_custom_call.1} parent=1 // loop_footer
      %s19 = sadd.s32 1, %s15
    $region7: #{tpu_custom_call.1} parent=1 // loop_footer_branch
      %14 = sbr.rel target = $region3
    $region8: #{tpu_custom_call.1} parent=1 // loop_exit
      _
    %625 = vsyncpa [#allocation3], 1
    %s626 = scalar_lea.sflag [#allocation3], 1
    %627 = vsyncpa %s626, 1
    %628 = vsyncpa [#allocation4], 1
    %s629 = scalar_lea.sflag [#allocation4], 1
    %630 = vsyncpa %s629, 1

</llo_original>
